<compile_context>
chip_gen: v5e
topology: v5e:2x2
jax: 0.10.0
libtpu: 0.0.40
codegen_flags: <defaults>
</compile_context>

<pallas_src>
import functools

import jax
import jax.numpy as jnp
from jax import lax
from jax.experimental import pallas as pl
from jax.experimental.pallas import tpu as pltpu


def _round_up(v, m):
    return (v + m - 1) // m * m


def _pick_row_tile(ho, wo):
    """Largest divisor of `ho` giving a few hundred output rows per MXU call and >=2 tiles."""
    target = max(1, min(ho, max(1, 256 // max(wo, 1))))
    if target >= ho and ho >= 2:
        target = max(1, ho // 2)
    for t in range(target, 0, -1):
        if ho % t == 0:
            return t
    return ho


def _downsample_kernel(xm_ref, xt_ref, w_ref, b_ref, out_ref, *, tho, wo, cp, coutp):
    # xm_ref : (1, tho, 2, wo+1, 2*cp)  main row-pairs of the padded NHWC input (this tile)
    # xt_ref : (1, 1,   2, wo+1, 2*cp)  halo row-pair (first pair below the tile)
    # w_ref  : (9*cp, coutp)            tap-major packed conv weights
    # b_ref  : (1, coutp)
    # out_ref: (1, tho, wo, coutp)      lane-dense output block
    taps = []
    for kh in range(3):
        for kw in range(3):
            col = pl.ds(kw // 2, wo)          # contiguous col-pair window (no stride)
            chs = pl.ds((kw % 2) * cp, cp)    # even/odd-col channels, lane-aligned
            if kh < 2:                        # rows 2i+kh live in this tile's pairs
                slab = xm_ref[0, :, kh, col, chs]                      # (tho, wo, cp)
            else:                             # rows 2i+2: pairs 1..tho-1 + halo pair
                tail = xt_ref[0, :, 0, col, chs]                       # (1, wo, cp)
                if tho > 1:
                    body = xm_ref[0, pl.ds(1, tho - 1), 0, col, chs]   # (tho-1, wo, cp)
                    slab = jnp.concatenate([body, tail], axis=0)
                else:
                    slab = tail
            taps.append(slab)

    # One fused K = 9*cp matmul on the MXU (f32 accumulate inside the MXU), single bias add.
    lhs = jnp.concatenate(taps, axis=-1).reshape(tho * wo, 9 * cp)
    acc = jnp.dot(lhs, w_ref[...], preferred_element_type=jnp.float32)
    acc = acc + b_ref[...].astype(jnp.float32)
    out_ref[...] = acc.reshape(1, tho, wo, coutp).astype(out_ref.dtype)


def downsample(x, w_oihw, b, *, row_tile=None):
    """x: (B, C, H, W); w_oihw: (Cout, C, 3, 3); b: (Cout,) -> (B, Cout, ceil(H/2), ceil(W/2))."""
    B, C, H, W = x.shape
    Cout = w_oihw.shape[0]
    Ho, Wo = (H + 1) // 2, (W + 1) // 2
    Cp = _round_up(C, 128)          # lane-pad input channels (zeros -> result unchanged)
    CoutP = _round_up(Cout, 128)    # lane-dense (unmasked) output stores

    # ---- glue, one pass over x: NCHW -> NHWC, zero-pad spatial + channels ----
    xp = jnp.pad(jnp.transpose(x, (0, 2, 3, 1)),
                 ((0, 0), (1, 2 * Ho + 1 - H), (1, 2 * Wo + 1 - W), (0, Cp - C)))
    # Free reshape (same bytes, row-major): (B, 2*(Ho+1), 2*(Wo+1), Cp)
    #   -> (B, Ho+1, 2, Wo+1, 2*Cp)   [row-pair, row-parity, col-pair, even|odd col chans]
    xr = xp.reshape(B, Ho + 1, 2, Wo + 1, 2 * Cp)

    # weights OIHW -> (3, 3, Cp, CoutP) -> tap-major (9*Cp, CoutP); bias -> (1, CoutP)
    wt = jnp.transpose(w_oihw, (2, 3, 1, 0))
    wt = jnp.pad(wt, ((0, 0), (0, 0), (0, Cp - C), (0, CoutP - Cout)))
    wmat = wt.reshape(9 * Cp, CoutP)
    b2 = jnp.pad(b, (0, CoutP - Cout)).reshape(1, CoutP)

    tho = row_tile if row_tile is not None else _pick_row_tile(Ho, Wo)
    assert Ho % tho == 0, "row_tile must divide the output height"
    nt = Ho // tho

    itm = x.dtype.itemsize
    in_block = (tho + 1) * 2 * (Wo + 1) * 2 * Cp * itm
    w_bytes = 9 * Cp * CoutP * wmat.dtype.itemsize + CoutP * b2.dtype.itemsize
    out_block = tho * Wo * CoutP * itm
    scratch = tho * Wo * (9 * Cp + CoutP) * 4
    est_vmem = 2 * (in_block + w_bytes + out_block) + scratch
    vmem_limit = int(min(64 * 1024 * 1024, max(32 * 1024 * 1024, 2 * est_vmem)))

    kernel = functools.partial(_downsample_kernel, tho=tho, wo=Wo, cp=Cp, coutp=CoutP)

    out = pl.pallas_call(
        kernel,
        out_shape=jax.ShapeDtypeStruct((B, Ho, Wo, CoutP), x.dtype),
        grid_spec=pltpu.PrefetchScalarGridSpec(
            num_scalar_prefetch=0,
            grid=(B, nt),
            in_specs=[
                # main row-pair tile of this batch element
                pl.BlockSpec((1, tho, 2, Wo + 1, 2 * Cp),
                             lambda bi, r: (bi, r, 0, 0, 0)),
                # 1-row-pair halo immediately below the tile (same array, 2nd view)
                pl.BlockSpec((1, 1, 2, Wo + 1, 2 * Cp),
                             lambda bi, r: (bi, (r + 1) * tho, 0, 0, 0)),
                # grid-invariant weights / bias (constant index map -> DMA'd once)
                pl.BlockSpec((9 * Cp, CoutP), lambda bi, r: (0, 0)),
                pl.BlockSpec((1, CoutP), lambda bi, r: (0, 0)),
            ],
            out_specs=pl.BlockSpec((1, tho, Wo, CoutP), lambda bi, r: (bi, r, 0, 0)),
        ),
        compiler_params=pltpu.CompilerParams(
            dimension_semantics=("parallel", "parallel"),
            vmem_limit_bytes=vmem_limit),
        cost_estimate=pl.CostEstimate(
            flops=2 * B * Ho * Wo * 9 * Cp * CoutP,
            transcendentals=0,
            bytes_accessed=(xr.size * itm + wmat.size * wmat.dtype.itemsize
                            + B * Ho * Wo * CoutP * itm)),
    )(xr, xr, wmat, b2)

    # glue: drop Cout padding; return NCHW to match the PyTorch module.  A fused NHWC
    # consumer should use `out[..., :Cout]` directly and skip this extra HBM pass.
    return jnp.transpose(out[..., :Cout], (0, 3, 1, 2))


def reference(x, w_oihw, b):
    y = lax.conv_general_dilated(
        x, w_oihw, window_strides=(2, 2), padding=((1, 1), (1, 1)),
        dimension_numbers=("NCHW", "OIHW", "NCHW"),
        precision=lax.Precision.HIGHEST)
    return y + b[None, :, None, None]


if __name__ == "__main__":
    key = jax.random.PRNGKey(0)
    k = jax.random.split(key, 6)

    # Config 1: keep_dim=False -> Cout = 2 * dim
    B, dim, H, W = 2, 64, 16, 16
    Cout = 2 * dim
    x = jax.random.normal(k[0], (B, dim, H, W), jnp.float32)
    w = jax.random.normal(k[1], (Cout, dim, 3, 3), jnp.float32) * (2.0 / (dim * 9)) ** 0.5
    bias = jax.random.normal(k[2], (Cout,), jnp.float32) * 0.02

    out = jax.block_until_ready(jax.jit(downsample)(x, w, bias))
    ref = reference(x, w, bias)
    assert out.shape == (B, Cout, H // 2, W // 2)
    assert jnp.allclose(out, ref, rtol=1e-3, atol=1e-3), "mismatch vs lax.conv reference (1)"

    # Config 2: keep_dim=True -> Cout = dim (< 128, exercises the Cout lane-padding path)
    Cout2 = dim
    w2 = jax.random.normal(k[3], (Cout2, dim, 3, 3), jnp.float32) * (2.0 / (dim * 9)) ** 0.5
    bias2 = jax.random.normal(k[4], (Cout2,), jnp.float32) * 0.02
    out2 = jax.block_until_ready(jax.jit(downsample)(x, w2, bias2))
    ref2 = reference(x, w2, bias2)
    assert out2.shape == (B, Cout2, H // 2, W // 2)
    assert jnp.allclose(out2, ref2, rtol=1e-3, atol=1e-3), "mismatch vs lax.conv reference (2)"

    print("KERNEL_OK")
</pallas_src>

<mosaic_0001>
module attributes {stable_mosaic.version = 11 : i64} {
  func.func @_downsample_kernel(%arg0: i32, %arg1: i32, %arg2: memref<1x4x2x9x256xf32, #tpu.memory_space<vmem>>, %arg3: memref<1x1x2x9x256xf32, #tpu.memory_space<vmem>>, %arg4: memref<1152x128xf32, #tpu.memory_space<vmem>>, %arg5: memref<1x128xf32, #tpu.memory_space<vmem>>, %arg6: memref<1x4x8x128xf32, #tpu.memory_space<vmem>>) attributes {dimension_semantics = [#tpu.dimension_semantics<parallel>, #tpu.dimension_semantics<parallel>], iteration_bounds = array<i64: 2, 2>, scalar_prefetch = 0 : i64, scratch_operands = 0 : i64, tpu.core_type = #tpu.core_type<tc>, window_params = [{transform_indices = @transform_0, window_bounds = array<i64: 1, 4, 2, 9, 256>}, {transform_indices = @transform_1, window_bounds = array<i64: 1, 1, 2, 9, 256>}, {pipeline_mode = #tpu.pipeline_mode<synchronous>, transform_indices = @transform_2, window_bounds = array<i64: 1152, 128>}, {pipeline_mode = #tpu.pipeline_mode<synchronous>, transform_indices = @transform_3, window_bounds = array<i64: 1, 128>}, {transform_indices = @transform_4, window_bounds = array<i64: 1, 4, 8, 128>}]} {
    %c0 = arith.constant 0 : index
    %c0_0 = arith.constant 0 : index
    %c0_1 = arith.constant 0 : index
    %c0_2 = arith.constant 0 : index
    %c0_3 = arith.constant 0 : index
    %0 = vector.load %arg2[%c0, %c0_0, %c0_1, %c0_2, %c0_3] : memref<1x4x2x9x256xf32, #tpu.memory_space<vmem>>, vector<1x4x1x8x128xf32>
    %1 = vector.shape_cast %0 : vector<1x4x1x8x128xf32> to vector<4x8x128xf32>
    %c0_4 = arith.constant 0 : index
    %c0_5 = arith.constant 0 : index
    %c0_6 = arith.constant 0 : index
    %c0_7 = arith.constant 0 : index
    %c128 = arith.constant 128 : index
    %2 = vector.load %arg2[%c0_4, %c0_5, %c0_6, %c0_7, %c128] : memref<1x4x2x9x256xf32, #tpu.memory_space<vmem>>, vector<1x4x1x8x128xf32>
    %3 = vector.shape_cast %2 : vector<1x4x1x8x128xf32> to vector<4x8x128xf32>
    %c0_8 = arith.constant 0 : index
    %c0_9 = arith.constant 0 : index
    %c0_10 = arith.constant 0 : index
    %c1 = arith.constant 1 : index
    %c0_11 = arith.constant 0 : index
    %4 = vector.load %arg2[%c0_8, %c0_9, %c0_10, %c1, %c0_11] : memref<1x4x2x9x256xf32, #tpu.memory_space<vmem>>, vector<1x4x1x8x128xf32>
    %5 = vector.shape_cast %4 : vector<1x4x1x8x128xf32> to vector<4x8x128xf32>
    %c0_12 = arith.constant 0 : index
    %c0_13 = arith.constant 0 : index
    %c1_14 = arith.constant 1 : index
    %c0_15 = arith.constant 0 : index
    %c0_16 = arith.constant 0 : index
    %6 = vector.load %arg2[%c0_12, %c0_13, %c1_14, %c0_15, %c0_16] : memref<1x4x2x9x256xf32, #tpu.memory_space<vmem>>, vector<1x4x1x8x128xf32>
    %7 = vector.shape_cast %6 : vector<1x4x1x8x128xf32> to vector<4x8x128xf32>
    %c0_17 = arith.constant 0 : index
    %c0_18 = arith.constant 0 : index
    %c1_19 = arith.constant 1 : index
    %c0_20 = arith.constant 0 : index
    %c128_21 = arith.constant 128 : index
    %8 = vector.load %arg2[%c0_17, %c0_18, %c1_19, %c0_20, %c128_21] : memref<1x4x2x9x256xf32, #tpu.memory_space<vmem>>, vector<1x4x1x8x128xf32>
    %9 = vector.shape_cast %8 : vector<1x4x1x8x128xf32> to vector<4x8x128xf32>
    %c0_22 = arith.constant 0 : index
    %c0_23 = arith.constant 0 : index
    %c1_24 = arith.constant 1 : index
    %c1_25 = arith.constant 1 : index
    %c0_26 = arith.constant 0 : index
    %10 = vector.load %arg2[%c0_22, %c0_23, %c1_24, %c1_25, %c0_26] : memref<1x4x2x9x256xf32, #tpu.memory_space<vmem>>, vector<1x4x1x8x128xf32>
    %11 = vector.shape_cast %10 : vector<1x4x1x8x128xf32> to vector<4x8x128xf32>
    %c0_27 = arith.constant 0 : index
    %c0_28 = arith.constant 0 : index
    %c0_29 = arith.constant 0 : index
    %c0_30 = arith.constant 0 : index
    %c0_31 = arith.constant 0 : index
    %12 = vector.load %arg3[%c0_27, %c0_28, %c0_29, %c0_30, %c0_31] : memref<1x1x2x9x256xf32, #tpu.memory_space<vmem>>, vector<1x1x1x8x128xf32>
    %13 = vector.shape_cast %12 : vector<1x1x1x8x128xf32> to vector<1x8x128xf32>
    %c0_32 = arith.constant 0 : index
    %c1_33 = arith.constant 1 : index
    %c0_34 = arith.constant 0 : index
    %c0_35 = arith.constant 0 : index
    %c0_36 = arith.constant 0 : index
    %14 = vector.load %arg2[%c0_32, %c1_33, %c0_34, %c0_35, %c0_36] : memref<1x4x2x9x256xf32, #tpu.memory_space<vmem>>, vector<1x3x1x8x128xf32>
    %15 = vector.shape_cast %14 : vector<1x3x1x8x128xf32> to vector<3x8x128xf32>
    %16 = tpu.concatenate %15, %13 in 0 : vector<3x8x128xf32>, vector<1x8x128xf32> -> vector<4x8x128xf32>
    %c0_37 = arith.constant 0 : index
    %c0_38 = arith.constant 0 : index
    %c0_39 = arith.constant 0 : index
    %c0_40 = arith.constant 0 : index
    %c128_41 = arith.constant 128 : index
    %17 = vector.load %arg3[%c0_37, %c0_38, %c0_39, %c0_40, %c128_41] : memref<1x1x2x9x256xf32, #tpu.memory_space<vmem>>, vector<1x1x1x8x128xf32>
    %18 = vector.shape_cast %17 : vector<1x1x1x8x128xf32> to vector<1x8x128xf32>
    %c0_42 = arith.constant 0 : index
    %c1_43 = arith.constant 1 : index
    %c0_44 = arith.constant 0 : index
    %c0_45 = arith.constant 0 : index
    %c128_46 = arith.constant 128 : index
    %19 = vector.load %arg2[%c0_42, %c1_43, %c0_44, %c0_45, %c128_46] : memref<1x4x2x9x256xf32, #tpu.memory_space<vmem>>, vector<1x3x1x8x128xf32>
    %20 = vector.shape_cast %19 : vector<1x3x1x8x128xf32> to vector<3x8x128xf32>
    %21 = tpu.concatenate %20, %18 in 0 : vector<3x8x128xf32>, vector<1x8x128xf32> -> vector<4x8x128xf32>
    %c0_47 = arith.constant 0 : index
    %c0_48 = arith.constant 0 : index
    %c0_49 = arith.constant 0 : index
    %c1_50 = arith.constant 1 : index
    %c0_51 = arith.constant 0 : index
    %22 = vector.load %arg3[%c0_47, %c0_48, %c0_49, %c1_50, %c0_51] : memref<1x1x2x9x256xf32, #tpu.memory_space<vmem>>, vector<1x1x1x8x128xf32>
    %23 = vector.shape_cast %22 : vector<1x1x1x8x128xf32> to vector<1x8x128xf32>
    %c0_52 = arith.constant 0 : index
    %c1_53 = arith.constant 1 : index
    %c0_54 = arith.constant 0 : index
    %c1_55 = arith.constant 1 : index
    %c0_56 = arith.constant 0 : index
    %24 = vector.load %arg2[%c0_52, %c1_53, %c0_54, %c1_55, %c0_56] : memref<1x4x2x9x256xf32, #tpu.memory_space<vmem>>, vector<1x3x1x8x128xf32>
    %25 = vector.shape_cast %24 : vector<1x3x1x8x128xf32> to vector<3x8x128xf32>
    %26 = tpu.concatenate %25, %23 in 0 : vector<3x8x128xf32>, vector<1x8x128xf32> -> vector<4x8x128xf32>
    %27 = tpu.concatenate %1, %3, %5, %7, %9, %11, %16, %21, %26 in 2 : vector<4x8x128xf32>, vector<4x8x128xf32>, vector<4x8x128xf32>, vector<4x8x128xf32>, vector<4x8x128xf32>, vector<4x8x128xf32>, vector<4x8x128xf32>, vector<4x8x128xf32>, vector<4x8x128xf32> -> vector<4x8x1152xf32>
    %28 = vector.shape_cast %27 : vector<4x8x1152xf32> to vector<32x1152xf32>
    %c0_57 = arith.constant 0 : index
    %c0_58 = arith.constant 0 : index
    %29 = vector.load %arg4[%c0_57, %c0_58] : memref<1152x128xf32, #tpu.memory_space<vmem>>, vector<1152x128xf32>
    %cst = arith.constant dense<0.000000e+00> : vector<32x128xf32>
    %30 = tpu.matmul %28, %29, %cst {dimension_numbers = #tpu.dot_dimension_numbers<[1], [0], [0], [1], [0, 0, 1, 1], [], []>} : vector<32x1152xf32>, vector<1152x128xf32>, vector<32x128xf32> -> vector<32x128xf32>
    %c0_59 = arith.constant 0 : index
    %c0_60 = arith.constant 0 : index
    %31 = vector.load %arg5[%c0_59, %c0_60] : memref<1x128xf32, #tpu.memory_space<vmem>>, vector<1x128xf32>
    %32 = vector.broadcast %31 : vector<1x128xf32> to vector<32x128xf32>
    %33 = arith.addf %30, %32 : vector<32x128xf32>
    %34 = vector.shape_cast %33 : vector<32x128xf32> to vector<1x4x8x128xf32>
    %c0_61 = arith.constant 0 : index
    %c0_62 = arith.constant 0 : index
    %c0_63 = arith.constant 0 : index
    %c0_64 = arith.constant 0 : index
    %35 = vector.load %arg6[%c0_61, %c0_62, %c0_63, %c0_64] : memref<1x4x8x128xf32, #tpu.memory_space<vmem>>, vector<1x4x8x128xf32>
    tpu.vector_store %arg6[%c0_61, %c0_62, %c0_63, %c0_64], %34 {strides = array<i32>} : memref<1x4x8x128xf32, #tpu.memory_space<vmem>>, vector<1x4x8x128xf32>,
    return
  }
  func.func @transform_0(%arg0: i32, %arg1: i32) -> (i32, i32, i32, i32, i32) {
    %c0_i32 = arith.constant 0 : i32
    %c0_i32_0 = arith.constant 0 : i32
    %c0_i32_1 = arith.constant 0 : i32
    %c0_i32_2 = arith.constant 0 : i32
    return %arg0, %arg1, %c0_i32, %c0_i32_0, %c0_i32_1 : i32, i32, i32, i32, i32
  }
  func.func @transform_1(%arg0: i32, %arg1: i32) -> (i32, i32, i32, i32, i32) {
    %c1_i32 = arith.constant 1 : i32
    %0 = arith.addi %arg1, %c1_i32 : i32
    %c4_i32 = arith.constant 4 : i32
    %1 = arith.muli %0, %c4_i32 : i32
    %c0_i32 = arith.constant 0 : i32
    %c0_i32_0 = arith.constant 0 : i32
    %c0_i32_1 = arith.constant 0 : i32
    %c0_i32_2 = arith.constant 0 : i32
    return %arg0, %1, %c0_i32, %c0_i32_0, %c0_i32_1 : i32, i32, i32, i32, i32
  }
  func.func @transform_2(%arg0: i32, %arg1: i32) -> (i32, i32) {
    %c0_i32 = arith.constant 0 : i32
    %c0_i32_0 = arith.constant 0 : i32
    %c0_i32_1 = arith.constant 0 : i32
    return %c0_i32, %c0_i32_0 : i32, i32
  }
  func.func @transform_3(%arg0: i32, %arg1: i32) -> (i32, i32) {
    %c0_i32 = arith.constant 0 : i32
    %c0_i32_0 = arith.constant 0 : i32
    %c0_i32_1 = arith.constant 0 : i32
    return %c0_i32, %c0_i32_0 : i32, i32
  }
  func.func @transform_4(%arg0: i32, %arg1: i32) -> (i32, i32, i32, i32) {
    %c0_i32 = arith.constant 0 : i32
    %c0_i32_0 = arith.constant 0 : i32
    %c0_i32_1 = arith.constant 0 : i32
    return %arg0, %arg1, %c0_i32, %c0_i32_0 : i32, i32, i32, i32
  }
}

</mosaic_0001>

<llo_original>
// kernel: downsample.1
$region0: #{downsample.1}
  #allocation0 [shape = 'u32[]', space=smem, size = 0x4, offset = 0x4, fixed_abs, tag = 'smem constant byte address 0x4 - core index']
  #allocation1 [shape = 'u32[72,128]{1,0:T(1,128)}', space=vmem, size = 0x9000, scoped, tag = 'internal scratch']
  %s0 = inlined_call_operand.vmem [shape: f32[2,9,2,9,256], index: 0, kind: input, shape index: {}, may-alias: {0,1}]
  %s1 = inlined_call_operand.vmem [shape: f32[2,9,2,9,256], index: 1, kind: input, shape index: {}, may-alias: {0,1}]
  %s2 = inlined_call_operand.vmem [shape: f32[1152,128], index: 2, kind: input, shape index: {}]
  %s3 = inlined_call_operand.vmem [shape: f32[1,128], index: 3, kind: input, shape index: {}]
  %s4 = inlined_call_operand.hbm [shape: f32[2,8,8,128], index: 4, kind: output, shape index: {}]
  %s5 = sld [smem:[#allocation0]]
  $region49: #{downsample.1} parent=0
    _
  %s7 = ssub.s32 1, %s5
  %s8 = scalar_select 0, %s7, %s5
  $region1: #{downsample.1} parent=0
    #allocation2 [shape = 'u8[32768]{0}', space=vmem, size = 0x8000, scoped, tag = 'output window, operand 0']
    #allocation3 [shape = 's32[2]{0}', space=sflag, size = 0x8, scoped, tag = 'scoped memory for downsample.1']
    %9 = vsyncpa [#allocation3], 0
    %s10 = scalar_lea.sflag [#allocation3], 1
    %11 = vsyncpa %s10, 0
    loop: start=0, step=1, limit=6
    $region2: #{downsample.1} parent=1 // loop_pre_header
      _
    $region3: #{downsample.1} parent=1 // loop_header
      %s13 = sphi 0, %s17
      %p14 = scmp.ge.s32.totalorder %s13, 6
      %s20 = sphi 0, %s32
      %s21 = sphi 0, %s28
      %s22 = sphi 0, %s20
      %s23 = sphi 0, %s21
      %s24 = sphi 0, %s22
      %s25 = sphi 0, %s23
      %s37 = sphi 0, %s39
      %s40 = sphi 0, %s37
      %s41 = sphi 0, %s40
      %s57 = sphi 0, %s41
      %s69 = sphi 0, %s71
      %s72 = sphi 0, %s69
      %s73 = sphi 0, %s72
      %s89 = sphi 0, %s73
      %s93 = sphi 0, %s93
      %s95 = sphi 0, %s93
      %s96 = sphi 0, %s95
      %s110 = sphi 0, %s96
      %s114 = sphi 0, %s114
      %s116 = sphi 0, %s114
      %s117 = sphi 0, %s116
      %s131 = sphi 0, %s117
      %s139 = sphi 0, %s141
      %s142 = sphi 0, %s139
      %s143 = sphi 0, %s142
      %s159 = sphi 0, %s143
    $region4: #{downsample.1} parent=1 // loop_header_branch
      %16 = sbr.rel (%p14) target = $region8
    $region5: #{downsample.1} parent=1 // loop_body
      %s18 = ssub.s32 %s13, 1
      %s19 = ssub.s32 %s13, 2
      %s26 = sadd.s32 1, %s21
      %p27 = scmp.ge.s32.totalorder %s26, 2
      %s28 = scalar_select %p27, 0, %s26
      %s29 = sadd.s32 1, %s20
      %s30 = scalar_select %p27, %s29, %s20
      %p31 = scmp.ge.s32.totalorder %s30, 2
      %s32 = scalar_select %p31, 0, %s30
      %s33 = ssub.s32 %s20, %s32
      %s34 = ssub.s32 %s21, %s28
      %s35 = sor.u32 %s33, %s34
      %p36 = scmp.eq.s32.totalorder %s35, 0
      %s38 = sadd.s32 %s37, 1
      %s39 = scalar_select %p36, %s37, %s38
      %p42 = pneg %p36
      %p43 = scmp.eq.s32.totalorder %s13, 3
      %p44 = por %p42, %p43
      %p45 = scmp.ne.s32.totalorder %s37, %s40
      %p46 = scmp.eq.s32.totalorder %s13, 0
      %p47 = por %p45, %p46
      %p48 = scmp.ne.s32.totalorder %s37, %s40
      %p49 = scmp.eq.s32.totalorder %s18, 3
      %p50 = por %p48, %p49
      %p51 = scmp.ne.s32.totalorder %s40, %s41
      %p52 = scmp.eq.s32.totalorder %s18, 0
      %p53 = por %p51, %p52
      %p54 = scmp.ne.s32.totalorder %s40, %s41
      %p55 = scmp.eq.s32.totalorder %s19, 3
      %p56 = por %p54, %p55
      %p58 = scmp.ne.s32.totalorder %s41, %s57
      %p59 = scmp.eq.s32.totalorder %s19, 0
      %p60 = por %p58, %p59
      %s61 = sadd.s32 %s21, 1
      %s62 = smul.u32 %s61, 4
      %s63 = sadd.s32 %s28, 1
      %s64 = smul.u32 %s63, 4
      %s65 = ssub.s32 %s20, %s32
      %s66 = ssub.s32 %s62, %s64
      %s67 = sor.u32 %s65, %s66
      %p68 = scmp.eq.s32.totalorder %s67, 0
      %s70 = sadd.s32 %s69, 1
      %s71 = scalar_select %p68, %s69, %s70
      %p74 = pneg %p68
      %p75 = scmp.eq.s32.totalorder %s13, 3
      %p76 = por %p74, %p75
      %p77 = scmp.ne.s32.totalorder %s69, %s72
      %p78 = scmp.eq.s32.totalorder %s13, 0
      %p79 = por %p77, %p78
      %p80 = scmp.ne.s32.totalorder %s69, %s72
      %p81 = scmp.eq.s32.totalorder %s18, 3
      %p82 = por %p80, %p81
      %p83 = scmp.ne.s32.totalorder %s72, %s73
      %p84 = scmp.eq.s32.totalorder %s18, 0
      %p85 = por %p83, %p84
      %p86 = scmp.ne.s32.totalorder %s72, %s73
      %p87 = scmp.eq.s32.totalorder %s19, 3
      %p88 = por %p86, %p87
      %p90 = scmp.ne.s32.totalorder %s73, %s89
      %p91 = scmp.eq.s32.totalorder %s19, 0
      %p92 = por %p90, %p91
      %s94 = sadd.s32 %s93, 1
      %p97 = scmp.eq.s32.totalorder %s13, 3
      %p98 = scmp.ne.s32.totalorder %s93, %s95
      %p99 = scmp.eq.s32.totalorder %s13, 0
      %p100 = por %p98, %p99
      %p101 = scmp.ne.s32.totalorder %s93, %s95
      %p102 = scmp.eq.s32.totalorder %s18, 3
      %p103 = por %p101, %p102
      %p104 = scmp.ne.s32.totalorder %s95, %s96
      %p105 = scmp.eq.s32.totalorder %s18, 0
      %p106 = por %p104, %p105
      %p107 = scmp.ne.s32.totalorder %s95, %s96
      %p108 = scmp.eq.s32.totalorder %s19, 3
      %p109 = por %p107, %p108
      %p111 = scmp.ne.s32.totalorder %s96, %s110
      %p112 = scmp.eq.s32.totalorder %s19, 0
      %p113 = por %p111, %p112
      %s115 = sadd.s32 %s114, 1
      %p118 = scmp.eq.s32.totalorder %s13, 3
      %p119 = scmp.ne.s32.totalorder %s114, %s116
      %p120 = scmp.eq.s32.totalorder %s13, 0
      %p121 = por %p119, %p120
      %p122 = scmp.ne.s32.totalorder %s114, %s116
      %p123 = scmp.eq.s32.totalorder %s18, 3
      %p124 = por %p122, %p123
      %p125 = scmp.ne.s32.totalorder %s116, %s117
      %p126 = scmp.eq.s32.totalorder %s18, 0
      %p127 = por %p125, %p126
      %p128 = scmp.ne.s32.totalorder %s116, %s117
      %p129 = scmp.eq.s32.totalorder %s19, 3
      %p130 = por %p128, %p129
      %p132 = scmp.ne.s32.totalorder %s117, %s131
      %p133 = scmp.eq.s32.totalorder %s19, 0
      %p134 = por %p132, %p133
      %s135 = ssub.s32 %s20, %s32
      %s136 = ssub.s32 %s21, %s28
      %s137 = sor.u32 %s135, %s136
      %p138 = scmp.eq.s32.totalorder %s137, 0
      %s140 = sadd.s32 %s139, 1
      %s141 = scalar_select %p138, %s139, %s140
      %p144 = pneg %p138
      %p145 = scmp.eq.s32.totalorder %s13, 3
      %p146 = por %p144, %p145
      %p147 = scmp.ne.s32.totalorder %s139, %s142
      %p148 = scmp.eq.s32.totalorder %s13, 0
      %p149 = por %p147, %p148
      %p150 = scmp.ne.s32.totalorder %s139, %s142
      %p151 = scmp.eq.s32.totalorder %s18, 3
      %p152 = por %p150, %p151
      %p153 = scmp.ne.s32.totalorder %s142, %s143
      %p154 = scmp.eq.s32.totalorder %s18, 0
      %p155 = por %p153, %p154
      %p156 = scmp.ne.s32.totalorder %s142, %s143
      %p157 = scmp.eq.s32.totalorder %s19, 3
      %p158 = por %p156, %p157
      %p160 = scmp.ne.s32.totalorder %s143, %s159
      %p161 = scmp.eq.s32.totalorder %s19, 0
      %p162 = por %p160, %p161
      %p163 = scmp.le.s32.totalorder 1, %s13
      %p164 = scmp.lt.s32.totalorder %s13, 5
      %p165 = pnand %p163, %p164
      %p166 = pneg %p165
      // Predicated region
      $region9: #{downsample.1} parent=5 // pred_check
        _
      $region10: #{downsample.1} parent=5 // pred_check_branch
        %168 = sbr.rel (%p165) target = $region12
      $region11: #{downsample.1} parent=5 // pred_region
        %s169 = ssub.s32 %s13, 1
        // Predicated region
        $region13: #{downsample.1} parent=11 // pred_check
          %p170 = pneg %p106
        $region14: #{downsample.1} parent=11 // pred_check_branch
          %172 = sbr.rel (%p170) target = $region16
        $region15: #{downsample.1} parent=11 // pred_region
          _
        $region16: #{downsample.1} parent=11 // pred_fallthru
          _
        // Predicated region
        $region17: #{downsample.1} parent=11 // pred_check
          %p173 = pneg %p127
        $region18: #{downsample.1} parent=11 // pred_check_branch
          %175 = sbr.rel (%p173) target = $region20
        $region19: #{downsample.1} parent=11 // pred_region
          _
        $region20: #{downsample.1} parent=11 // pred_fallthru
          _
      $region12: #{downsample.1} parent=5 // pred_fallthru
        _
      %p176 = scmp.lt.s32.totalorder %s13, 4
      // Predicated region
      $region21: #{downsample.1} parent=5 // pred_check
        %p177 = pneg %p176
      $region22: #{downsample.1} parent=5 // pred_check_branch
        %179 = sbr.rel (%p177) target = $region24
      $region23: #{downsample.1} parent=5 // pred_region
        // Predicated region
        $region25: #{downsample.1} parent=23 // pred_check
          %p180 = pneg %p47
        $region26: #{downsample.1} parent=23 // pred_check_branch
          %182 = sbr.rel (%p180) target = $region28
        $region27: #{downsample.1} parent=23 // pred_region
          %s183 = smul.u32 4, %s21
          %s184 = ssub.s32 9, %s183
          %p185 = scmp.lt.s32.totalorder %s184, 4
          %s186 = scalar_select %p185, %s184, 4
          %s187 = smul.u32 8, %s186
          %s188 = smul.u32 %s187, 2
          %s189 = smul.u32 %s188, 2
          %s190 = smul.u32 %s189, 2
          %p191 = scmp.lt.s32.totalorder %s20, 1
          %s192 = scalar_select %p191, %s20, 1
          %p193 = scmp.lt.s32.totalorder %s183, 8
          %s194 = scalar_select %p193, %s183, 8
          %s195 = smul.addr %s194, 8
          %s196 = smul.addr %s192, 72
          %s197 = sadd.s32 %s195, %s196
          %s198 = smul.addr %s197, 8
          %s199 = scalar_lea.vmem %s0, %s198
          %s200 = smul.u32 4, %s21
          %s201 = ssub.s32 9, %s200
          %p202 = scmp.lt.s32.totalorder %s201, 4
          %s203 = scalar_select %p202, %s201, 4
          %s204 = smul.u32 8, %s203
          %s205 = smul.u32 %s204, 2
          %s206 = smul.u32 %s205, 2
          %s207 = smul.u32 %s206, 2
        $region28: #{downsample.1} parent=23 // pred_fallthru
          _
        // Predicated region
        $region29: #{downsample.1} parent=23 // pred_check
          %p208 = pneg %p79
        $region30: #{downsample.1} parent=23 // pred_check_branch
          %210 = sbr.rel (%p208) target = $region32
        $region31: #{downsample.1} parent=23 // pred_region
          %s211 = sadd.s32 %s21, 1
          %s212 = smul.u32 %s211, 4
          %p213 = scmp.lt.s32.totalorder %s20, 1
          %s214 = scalar_select %p213, %s20, 1
          %p215 = scmp.lt.s32.totalorder %s212, 8
          %s216 = scalar_select %p215, %s212, 8
          %s217 = smul.addr %s216, 8
          %s218 = smul.addr %s214, 72
          %s219 = sadd.s32 %s217, %s218
          %s220 = smul.addr %s219, 8
          %s221 = scalar_lea.vmem %s1, %s220
          %s222 = sadd.s32 %s21, 1
          %s223 = smul.u32 %s222, 4
        $region32: #{downsample.1} parent=23 // pred_fallthru
          _
      $region24: #{downsample.1} parent=5 // pred_fallthru
        _
      %p224 = scmp.le.s32.totalorder 1, %s13
      %p225 = scmp.lt.s32.totalorder %s13, 5
      %p226 = pnand %p224, %p225
      %p227 = pneg %p226
      // Predicated region
      $region33: #{downsample.1} parent=5 // pred_check
        _
      $region34: #{downsample.1} parent=5 // pred_check_branch
        %229 = sbr.rel (%p226) target = $region36
      $region35: #{downsample.1} parent=5 // pred_region
        %s230 = ssub.s32 %s13, 1
        %s231 = smul.u32 4, %s23
        %s232 = ssub.s32 9, %s231
        %p233 = scmp.lt.s32.totalorder %s232, 4
        %s234 = scalar_select %p233, %s232, 4
        %s235 = smul.u32 8, %s234
        %s236 = smul.u32 %s235, 2
        %s237 = smul.u32 %s236, 2
        %s238 = smul.u32 %s237, 2
        %p239 = scmp.lt.s32.totalorder %s22, 1
        %s240 = scalar_select %p239, %s22, 1
        %p241 = scmp.lt.s32.totalorder %s231, 8
        %s242 = scalar_select %p241, %s231, 8
        %s243 = smul.addr %s242, 8
        %s244 = smul.addr %s240, 72
        %s245 = sadd.s32 %s243, %s244
        %s246 = smul.addr %s245, 8
        %s247 = scalar_lea.vmem %s0, %s246
        %p248 = pneg %p53
        %p249 = pneg %p50
        %s250 = sadd.s32 %s23, 1
        %s251 = smul.u32 %s250, 4
        %p252 = scmp.lt.s32.totalorder %s22, 1
        %s253 = scalar_select %p252, %s22, 1
        %p254 = scmp.lt.s32.totalorder %s251, 8
        %s255 = scalar_select %p254, %s251, 8
        %s256 = smul.addr %s255, 8
        %s257 = smul.addr %s253, 72
        %s258 = sadd.s32 %s256, %s257
        %s259 = smul.addr %s258, 8
        %s260 = scalar_lea.vmem %s1, %s259
        %p261 = pneg %p85
        %p262 = pneg %p82
        %p263 = pneg %p106
        %p264 = pneg %p103
        %p265 = pneg %p127
        %p266 = pneg %p124
        %p267 = pneg %p155
        %p268 = pneg %p152
        %s269 = sand.u32 %s142, 1
        %s270 = scalar_lea.sflag [#allocation3], %s269
        %s271 = sand.u32 %s142, 1
        %s272 = smul.addr %s271, 32
        %s273 = scalar_lea.vmem [#allocation2], %s272
        %s274 = smul.u32 4, %s23
        %s275 = ssub.s32 9, %s274
        %p276 = scmp.lt.s32.totalorder %s275, 4
        %s277 = scalar_select %p276, %s275, 4
        %s278 = smul.u32 8, %s277
        %s279 = smul.u32 %s278, 2
        %s280 = smul.u32 %s279, 2
        %s281 = smul.u32 %s280, 2
        %p282 = scmp.lt.s32.totalorder %s22, 1
        %s283 = scalar_select %p282, %s22, 1
        %p284 = scmp.lt.s32.totalorder %s274, 8
        %s285 = scalar_select %p284, %s274, 8
        %s286 = smul.addr %s285, 8
        %s287 = smul.addr %s283, 72
        %s288 = sadd.s32 %s286, %s287
        %s289 = smul.addr %s288, 8
        %s290 = scalar_lea.vmem %s0, %s289
        %s291 = smul.u32 4, %s23
        %s292 = ssub.s32 9, %s291
        %p293 = scmp.lt.s32.totalorder %s292, 4
        %s294 = scalar_select %p293, %s292, 4
        %s295 = smul.u32 8, %s294
        %s296 = smul.u32 %s295, 2
        %s297 = smul.u32 %s296, 2
        %s298 = smul.u32 %s297, 2
        %s299 = sadd.s32 %s23, 1
        %s300 = smul.u32 %s299, 4
        %p301 = scmp.lt.s32.totalorder %s22, 1
        %s302 = scalar_select %p301, %s22, 1
        %p303 = scmp.lt.s32.totalorder %s300, 8
        %s304 = scalar_select %p303, %s300, 8
        %s305 = smul.addr %s304, 8
        %s306 = smul.addr %s302, 72
        %s307 = sadd.s32 %s305, %s306
        %s308 = smul.addr %s307, 8
        %s309 = scalar_lea.vmem %s1, %s308
        %s310 = sadd.s32 %s23, 1
        %s311 = smul.u32 %s310, 4
        %s312 = smul.u32 4, %s23
        %v313 = vld [vmem:[%s290] sm:$0xff]
        %v314 = vld [vmem:[%s290 + $0x40] sm:$0xff]
        %v315 = vld [vmem:[%s290 + $0x80] sm:$0xff]
        %v316 = vld [vmem:[%s290 + $0xc0] sm:$0xff]
        %v317 = vld [vmem:[%s290 + $0x8] sm:$0xff]
        %v318 = vld [vmem:[%s290 + $0x48] sm:$0xff]
        %v319 = vld [vmem:[%s290 + $0x88] sm:$0xff]
        %v320 = vld [vmem:[%s290 + $0xc8] sm:$0xff]
        %v321 = vld [vmem:[%s290] sm:$0xfe]
        %v322 = vld [vmem:[%s290 + $0x10] sm:$0x1]
        %v323 = vld [vmem:[%s290 + $0x40] sm:$0xfe]
        %v324 = vld [vmem:[%s290 + $0x50] sm:$0x1]
        %v325 = vld [vmem:[%s290 + $0x80] sm:$0xfe]
        %v326 = vld [vmem:[%s290 + $0x90] sm:$0x1]
        %v327 = vld [vmem:[%s290 + $0xc0] sm:$0xfe]
        %v328 = vld [vmem:[%s290 + $0xd0] sm:$0x1]
        %s329 = scalar_lea.vmem %s290, 32
        %v330 = vld [vmem:[%s329] sm:$0xff]
        %v331 = vld [vmem:[%s329 + $0x40] sm:$0xff]
        %v332 = vld [vmem:[%s329 + $0x80] sm:$0xff]
        %v333 = vld [vmem:[%s329 + $0xc0] sm:$0xff]
        %v334 = vld [vmem:[%s329 + $0x8] sm:$0xff]
        %v335 = vld [vmem:[%s329 + $0x48] sm:$0xff]
        %v336 = vld [vmem:[%s329 + $0x88] sm:$0xff]
        %v337 = vld [vmem:[%s329 + $0xc8] sm:$0xff]
        %v338 = vld [vmem:[%s329] sm:$0xfe]
        %v339 = vld [vmem:[%s329 + $0x10] sm:$0x1]
        %v340 = vld [vmem:[%s329 + $0x40] sm:$0xfe]
        %v341 = vld [vmem:[%s329 + $0x50] sm:$0x1]
        %v342 = vld [vmem:[%s329 + $0x80] sm:$0xfe]
        %v343 = vld [vmem:[%s329 + $0x90] sm:$0x1]
        %v344 = vld [vmem:[%s329 + $0xc0] sm:$0xfe]
        %v345 = vld [vmem:[%s329 + $0xd0] sm:$0x1]
        %v346 = vld [vmem:[%s309] sm:$0xff]
        %s347 = scalar_lea.vmem %s290, 64
        %v348 = vld [vmem:[%s347] sm:$0xff]
        %v349 = vld [vmem:[%s347 + $0x40] sm:$0xff]
        %v350 = vld [vmem:[%s347 + $0x80] sm:$0xff]
        %v351 = vld [vmem:[%s309 + $0x8] sm:$0xff]
        %v352 = vld [vmem:[%s347 + $0x8] sm:$0xff]
        %v353 = vld [vmem:[%s347 + $0x48] sm:$0xff]
        %v354 = vld [vmem:[%s347 + $0x88] sm:$0xff]
        %v355 = vld [vmem:[%s309] sm:$0xfe]
        %v356 = vld [vmem:[%s309 + $0x10] sm:$0x1]
        %v357 = vld [vmem:[%s347] sm:$0xfe]
        %v358 = vld [vmem:[%s347 + $0x10] sm:$0x1]
        %v359 = vld [vmem:[%s347 + $0x40] sm:$0xfe]
        %v360 = vld [vmem:[%s347 + $0x50] sm:$0x1]
        %v361 = vld [vmem:[%s347 + $0x80] sm:$0xfe]
        %v362 = vld [vmem:[%s347 + $0x90] sm:$0x1]
        %vm371 = vcmask 1046528
        %v372 = vrot.slane %v321, 1
        %v373 = vrot.slane %v322, 1
        %v374 = vsel %vm371, %v372, %v373
        %v375 = vrot.slane %v323, 1
        %v376 = vrot.slane %v324, 1
        %v377 = vsel %vm371, %v375, %v376
        %v378 = vrot.slane %v325, 1
        %v379 = vrot.slane %v326, 1
        %v380 = vsel %vm371, %v378, %v379
        %v381 = vrot.slane %v327, 1
        %v382 = vrot.slane %v328, 1
        %v383 = vsel %vm371, %v381, %v382
        %v396 = vrot.slane %v338, 1
        %v397 = vrot.slane %v339, 1
        %v398 = vsel %vm371, %v396, %v397
        %v399 = vrot.slane %v340, 1
        %v400 = vrot.slane %v341, 1
        %v401 = vsel %vm371, %v399, %v400
        %v402 = vrot.slane %v342, 1
        %v403 = vrot.slane %v343, 1
        %v404 = vsel %vm371, %v402, %v403
        %v405 = vrot.slane %v344, 1
        %v406 = vrot.slane %v345, 1
        %v407 = vsel %vm371, %v405, %v406
        %v420 = vrot.slane %v357, 1
        %v421 = vrot.slane %v358, 1
        %v422 = vsel %vm371, %v420, %v421
        %v423 = vrot.slane %v359, 1
        %v424 = vrot.slane %v360, 1
        %v425 = vsel %vm371, %v423, %v424
        %v426 = vrot.slane %v361, 1
        %v427 = vrot.slane %v362, 1
        %v428 = vsel %vm371, %v426, %v427
        %v429 = vrot.slane %v355, 1
        %v430 = vrot.slane %v356, 1
        %v431 = vsel %vm371, %v429, %v430
        %v436 = vld [vmem:[%s2] sm:$0xff]
        %v437 = vld [vmem:[%s2 + $0x8] sm:$0xff]
        %v438 = vld [vmem:[%s2 + $0x10] sm:$0xff]
        %v439 = vld [vmem:[%s2 + $0x18] sm:$0xff]
        %v440 = vld [vmem:[%s2 + $0x20] sm:$0xff]
        %v441 = vld [vmem:[%s2 + $0x28] sm:$0xff]
        %v442 = vld [vmem:[%s2 + $0x30] sm:$0xff]
        %v443 = vld [vmem:[%s2 + $0x38] sm:$0xff]
        %v444 = vld [vmem:[%s2 + $0x40] sm:$0xff]
        %v445 = vld [vmem:[%s2 + $0x48] sm:$0xff]
        %v446 = vld [vmem:[%s2 + $0x50] sm:$0xff]
        %v447 = vld [vmem:[%s2 + $0x58] sm:$0xff]
        %v448 = vld [vmem:[%s2 + $0x60] sm:$0xff]
        %v449 = vld [vmem:[%s2 + $0x68] sm:$0xff]
        %v450 = vld [vmem:[%s2 + $0x70] sm:$0xff]
        %v451 = vld [vmem:[%s2 + $0x78] sm:$0xff]
        %v452 = vld [vmem:[%s2 + $0x80] sm:$0xff]
        %v453 = vld [vmem:[%s2 + $0x88] sm:$0xff]
        %v454 = vld [vmem:[%s2 + $0x90] sm:$0xff]
        %v455 = vld [vmem:[%s2 + $0x98] sm:$0xff]
        %v456 = vld [vmem:[%s2 + $0xa0] sm:$0xff]
        %v457 = vld [vmem:[%s2 + $0xa8] sm:$0xff]
        %v458 = vld [vmem:[%s2 + $0xb0] sm:$0xff]
        %v459 = vld [vmem:[%s2 + $0xb8] sm:$0xff]
        %v460 = vld [vmem:[%s2 + $0xc0] sm:$0xff]
        %v461 = vld [vmem:[%s2 + $0xc8] sm:$0xff]
        %v462 = vld [vmem:[%s2 + $0xd0] sm:$0xff]
        %v463 = vld [vmem:[%s2 + $0xd8] sm:$0xff]
        %v464 = vld [vmem:[%s2 + $0xe0] sm:$0xff]
        %v465 = vld [vmem:[%s2 + $0xe8] sm:$0xff]
        %v466 = vld [vmem:[%s2 + $0xf0] sm:$0xff]
        %v467 = vld [vmem:[%s2 + $0xf8] sm:$0xff]
        %v468 = vld [vmem:[%s2 + $0x100] sm:$0xff]
        %v469 = vld [vmem:[%s2 + $0x108] sm:$0xff]
        %v470 = vld [vmem:[%s2 + $0x110] sm:$0xff]
        %v471 = vld [vmem:[%s2 + $0x118] sm:$0xff]
        %v472 = vld [vmem:[%s2 + $0x120] sm:$0xff]
        %v473 = vld [vmem:[%s2 + $0x128] sm:$0xff]
        %v474 = vld [vmem:[%s2 + $0x130] sm:$0xff]
        %v475 = vld [vmem:[%s2 + $0x138] sm:$0xff]
        %v476 = vld [vmem:[%s2 + $0x140] sm:$0xff]
        %v477 = vld [vmem:[%s2 + $0x148] sm:$0xff]
        %v478 = vld [vmem:[%s2 + $0x150] sm:$0xff]
        %v479 = vld [vmem:[%s2 + $0x158] sm:$0xff]
        %v480 = vld [vmem:[%s2 + $0x160] sm:$0xff]
        %v481 = vld [vmem:[%s2 + $0x168] sm:$0xff]
        %v482 = vld [vmem:[%s2 + $0x170] sm:$0xff]
        %v483 = vld [vmem:[%s2 + $0x178] sm:$0xff]
        %v484 = vld [vmem:[%s2 + $0x180] sm:$0xff]
        %v485 = vld [vmem:[%s2 + $0x188] sm:$0xff]
        %v486 = vld [vmem:[%s2 + $0x190] sm:$0xff]
        %v487 = vld [vmem:[%s2 + $0x198] sm:$0xff]
        %v488 = vld [vmem:[%s2 + $0x1a0] sm:$0xff]
        %v489 = vld [vmem:[%s2 + $0x1a8] sm:$0xff]
        %v490 = vld [vmem:[%s2 + $0x1b0] sm:$0xff]
        %v491 = vld [vmem:[%s2 + $0x1b8] sm:$0xff]
        %v492 = vld [vmem:[%s2 + $0x1c0] sm:$0xff]
        %v493 = vld [vmem:[%s2 + $0x1c8] sm:$0xff]
        %v494 = vld [vmem:[%s2 + $0x1d0] sm:$0xff]
        %v495 = vld [vmem:[%s2 + $0x1d8] sm:$0xff]
        %v496 = vld [vmem:[%s2 + $0x1e0] sm:$0xff]
        %v497 = vld [vmem:[%s2 + $0x1e8] sm:$0xff]
        %v498 = vld [vmem:[%s2 + $0x1f0] sm:$0xff]
        %v499 = vld [vmem:[%s2 + $0x1f8] sm:$0xff]
        %v500 = vld [vmem:[%s2 + $0x200] sm:$0xff]
        %v501 = vld [vmem:[%s2 + $0x208] sm:$0xff]
        %v502 = vld [vmem:[%s2 + $0x210] sm:$0xff]
        %v503 = vld [vmem:[%s2 + $0x218] sm:$0xff]
        %v504 = vld [vmem:[%s2 + $0x220] sm:$0xff]
        %v505 = vld [vmem:[%s2 + $0x228] sm:$0xff]
        %v506 = vld [vmem:[%s2 + $0x230] sm:$0xff]
        %v507 = vld [vmem:[%s2 + $0x238] sm:$0xff]
        %v508 = vld [vmem:[%s2 + $0x240] sm:$0xff]
        %v509 = vld [vmem:[%s2 + $0x248] sm:$0xff]
        %v510 = vld [vmem:[%s2 + $0x250] sm:$0xff]
        %v511 = vld [vmem:[%s2 + $0x258] sm:$0xff]
        %v512 = vld [vmem:[%s2 + $0x260] sm:$0xff]
        %v513 = vld [vmem:[%s2 + $0x268] sm:$0xff]
        %v514 = vld [vmem:[%s2 + $0x270] sm:$0xff]
        %v515 = vld [vmem:[%s2 + $0x278] sm:$0xff]
        %v516 = vld [vmem:[%s2 + $0x280] sm:$0xff]
        %v517 = vld [vmem:[%s2 + $0x288] sm:$0xff]
        %v518 = vld [vmem:[%s2 + $0x290] sm:$0xff]
        %v519 = vld [vmem:[%s2 + $0x298] sm:$0xff]
        %v520 = vld [vmem:[%s2 + $0x2a0] sm:$0xff]
        %v521 = vld [vmem:[%s2 + $0x2a8] sm:$0xff]
        %v522 = vld [vmem:[%s2 + $0x2b0] sm:$0xff]
        %v523 = vld [vmem:[%s2 + $0x2b8] sm:$0xff]
        %v524 = vld [vmem:[%s2 + $0x2c0] sm:$0xff]
        %v525 = vld [vmem:[%s2 + $0x2c8] sm:$0xff]
        %v526 = vld [vmem:[%s2 + $0x2d0] sm:$0xff]
        %v527 = vld [vmem:[%s2 + $0x2d8] sm:$0xff]
        %v528 = vld [vmem:[%s2 + $0x2e0] sm:$0xff]
        %v529 = vld [vmem:[%s2 + $0x2e8] sm:$0xff]
        %v530 = vld [vmem:[%s2 + $0x2f0] sm:$0xff]
        %v531 = vld [vmem:[%s2 + $0x2f8] sm:$0xff]
        %v532 = vld [vmem:[%s2 + $0x300] sm:$0xff]
        %v533 = vld [vmem:[%s2 + $0x308] sm:$0xff]
        %v534 = vld [vmem:[%s2 + $0x310] sm:$0xff]
        %v535 = vld [vmem:[%s2 + $0x318] sm:$0xff]
        %v536 = vld [vmem:[%s2 + $0x320] sm:$0xff]
        %v537 = vld [vmem:[%s2 + $0x328] sm:$0xff]
        %v538 = vld [vmem:[%s2 + $0x330] sm:$0xff]
        %v539 = vld [vmem:[%s2 + $0x338] sm:$0xff]
        %v540 = vld [vmem:[%s2 + $0x340] sm:$0xff]
        %v541 = vld [vmem:[%s2 + $0x348] sm:$0xff]
        %v542 = vld [vmem:[%s2 + $0x350] sm:$0xff]
        %v543 = vld [vmem:[%s2 + $0x358] sm:$0xff]
        %v544 = vld [vmem:[%s2 + $0x360] sm:$0xff]
        %v545 = vld [vmem:[%s2 + $0x368] sm:$0xff]
        %v546 = vld [vmem:[%s2 + $0x370] sm:$0xff]
        %v547 = vld [vmem:[%s2 + $0x378] sm:$0xff]
        %v548 = vld [vmem:[%s2 + $0x380] sm:$0xff]
        %v549 = vld [vmem:[%s2 + $0x388] sm:$0xff]
        %v550 = vld [vmem:[%s2 + $0x390] sm:$0xff]
        %v551 = vld [vmem:[%s2 + $0x398] sm:$0xff]
        %v552 = vld [vmem:[%s2 + $0x3a0] sm:$0xff]
        %v553 = vld [vmem:[%s2 + $0x3a8] sm:$0xff]
        %v554 = vld [vmem:[%s2 + $0x3b0] sm:$0xff]
        %v555 = vld [vmem:[%s2 + $0x3b8] sm:$0xff]
        %v556 = vld [vmem:[%s2 + $0x3c0] sm:$0xff]
        %v557 = vld [vmem:[%s2 + $0x3c8] sm:$0xff]
        %v558 = vld [vmem:[%s2 + $0x3d0] sm:$0xff]
        %v559 = vld [vmem:[%s2 + $0x3d8] sm:$0xff]
        %v560 = vld [vmem:[%s2 + $0x3e0] sm:$0xff]
        %v561 = vld [vmem:[%s2 + $0x3e8] sm:$0xff]
        %v562 = vld [vmem:[%s2 + $0x3f0] sm:$0xff]
        %v563 = vld [vmem:[%s2 + $0x3f8] sm:$0xff]
        %v564 = vld [vmem:[%s2 + $0x400] sm:$0xff]
        %v565 = vld [vmem:[%s2 + $0x408] sm:$0xff]
        %v566 = vld [vmem:[%s2 + $0x410] sm:$0xff]
        %v567 = vld [vmem:[%s2 + $0x418] sm:$0xff]
        %v568 = vld [vmem:[%s2 + $0x420] sm:$0xff]
        %v569 = vld [vmem:[%s2 + $0x428] sm:$0xff]
        %v570 = vld [vmem:[%s2 + $0x430] sm:$0xff]
        %v571 = vld [vmem:[%s2 + $0x438] sm:$0xff]
        %v572 = vld [vmem:[%s2 + $0x440] sm:$0xff]
        %v573 = vld [vmem:[%s2 + $0x448] sm:$0xff]
        %v574 = vld [vmem:[%s2 + $0x450] sm:$0xff]
        %v575 = vld [vmem:[%s2 + $0x458] sm:$0xff]
        %v576 = vld [vmem:[%s2 + $0x460] sm:$0xff]
        %v577 = vld [vmem:[%s2 + $0x468] sm:$0xff]
        %v578 = vld [vmem:[%s2 + $0x470] sm:$0xff]
        %v579 = vld [vmem:[%s2 + $0x478] sm:$0xff]
        %v580 = vld [vmem:[%s3] sm:$0x1]
        %v582 = vperm.slane %v580, 0
        %584 = vmatpush.msra.mxu0 %v451
        %585 = vmatpush.msra.mxu0 %v450
        %586 = vmatpush.msra.mxu0 %v449
        %587 = vmatpush.msra.mxu0 %v448
        %588 = vmatpush.msra.mxu0 %v447
        %589 = vmatpush.msra.mxu0 %v446
        %590 = vmatpush.msra.mxu0 %v445
        %591 = vmatpush.msra.mxu0 %v444
        %592 = vmatpush.msra.mxu0 %v443
        %593 = vmatpush.msra.mxu0 %v442
        %594 = vmatpush.msra.mxu0 %v441
        %595 = vmatpush.msra.mxu0 %v440
        %596 = vmatpush.msra.mxu0 %v439
        %597 = vmatpush.msra.mxu0 %v438
        %598 = vmatpush.msra.mxu0 %v437
        %599 = vmatpush.msra.mxu0 %v436
        %600 = vmatmul.f32.gmra.mxu0 %v313
        %v601 = vpop.f32.mrf.mxu0
        %v602 = vadd.f32 %v582, %v601
        %603 = vmatmul.f32.gmra.mxu0 %v314
        %v604 = vpop.f32.mrf.mxu0
        %v605 = vadd.f32 %v582, %v604
        %606 = vmatmul.f32.gmra.mxu0 %v315
        %v607 = vpop.f32.mrf.mxu0
        %v608 = vadd.f32 %v582, %v607
        %609 = vmatmul.f32.gmra.mxu0 %v316
        %v610 = vpop.f32.mrf.mxu0
        %v611 = vadd.f32 %v582, %v610
        %612 = vdwg.mxu0
        %613 = vmatpush.msra.mxu0 %v467
        %614 = vmatpush.msra.mxu0 %v466
        %615 = vmatpush.msra.mxu0 %v465
        %616 = vmatpush.msra.mxu0 %v464
        %617 = vmatpush.msra.mxu0 %v463
        %618 = vmatpush.msra.mxu0 %v462
        %619 = vmatpush.msra.mxu0 %v461
        %620 = vmatpush.msra.mxu0 %v460
        %621 = vmatpush.msra.mxu0 %v459
        %622 = vmatpush.msra.mxu0 %v458
        %623 = vmatpush.msra.mxu0 %v457
        %624 = vmatpush.msra.mxu0 %v456
        %625 = vmatpush.msra.mxu0 %v455
        %626 = vmatpush.msra.mxu0 %v454
        %627 = vmatpush.msra.mxu0 %v453
        %628 = vmatpush.msra.mxu0 %v452
        %629 = vmatmul.f32.gmra.mxu0 %v317
        %v630 = vpop.f32.mrf.mxu0
        %v631 = vadd.f32 %v602, %v630
        %632 = vmatmul.f32.gmra.mxu0 %v318
        %v633 = vpop.f32.mrf.mxu0
        %v634 = vadd.f32 %v605, %v633
        %635 = vmatmul.f32.gmra.mxu0 %v319
        %v636 = vpop.f32.mrf.mxu0
        %v637 = vadd.f32 %v608, %v636
        %638 = vmatmul.f32.gmra.mxu0 %v320
        %v639 = vpop.f32.mrf.mxu0
        %v640 = vadd.f32 %v611, %v639
        %641 = vdwg.mxu0
        %642 = vmatpush.msra.mxu0 %v483
        %643 = vmatpush.msra.mxu0 %v482
        %644 = vmatpush.msra.mxu0 %v481
        %645 = vmatpush.msra.mxu0 %v480
        %646 = vmatpush.msra.mxu0 %v479
        %647 = vmatpush.msra.mxu0 %v478
        %648 = vmatpush.msra.mxu0 %v477
        %649 = vmatpush.msra.mxu0 %v476
        %650 = vmatpush.msra.mxu0 %v475
        %651 = vmatpush.msra.mxu0 %v474
        %652 = vmatpush.msra.mxu0 %v473
        %653 = vmatpush.msra.mxu0 %v472
        %654 = vmatpush.msra.mxu0 %v471
        %655 = vmatpush.msra.mxu0 %v470
        %656 = vmatpush.msra.mxu0 %v469
        %657 = vmatpush.msra.mxu0 %v468
        %658 = vmatmul.f32.gmra.mxu0 %v374
        %v659 = vpop.f32.mrf.mxu0
        %v660 = vadd.f32 %v631, %v659
        %661 = vmatmul.f32.gmra.mxu0 %v377
        %v662 = vpop.f32.mrf.mxu0
        %v663 = vadd.f32 %v634, %v662
        %664 = vmatmul.f32.gmra.mxu0 %v380
        %v665 = vpop.f32.mrf.mxu0
        %v666 = vadd.f32 %v637, %v665
        %667 = vmatmul.f32.gmra.mxu0 %v383
        %v668 = vpop.f32.mrf.mxu0
        %v669 = vadd.f32 %v640, %v668
        %670 = vdwg.mxu0
        %671 = vmatpush.msra.mxu0 %v499
        %672 = vmatpush.msra.mxu0 %v498
        %673 = vmatpush.msra.mxu0 %v497
        %674 = vmatpush.msra.mxu0 %v496
        %675 = vmatpush.msra.mxu0 %v495
        %676 = vmatpush.msra.mxu0 %v494
        %677 = vmatpush.msra.mxu0 %v493
        %678 = vmatpush.msra.mxu0 %v492
        %679 = vmatpush.msra.mxu0 %v491
        %680 = vmatpush.msra.mxu0 %v490
        %681 = vmatpush.msra.mxu0 %v489
        %682 = vmatpush.msra.mxu0 %v488
        %683 = vmatpush.msra.mxu0 %v487
        %684 = vmatpush.msra.mxu0 %v486
        %685 = vmatpush.msra.mxu0 %v485
        %686 = vmatpush.msra.mxu0 %v484
        %687 = vmatmul.f32.gmra.mxu0 %v330
        %v688 = vpop.f32.mrf.mxu0
        %v689 = vadd.f32 %v660, %v688
        %690 = vmatmul.f32.gmra.mxu0 %v331
        %v691 = vpop.f32.mrf.mxu0
        %v692 = vadd.f32 %v663, %v691
        %693 = vmatmul.f32.gmra.mxu0 %v332
        %v694 = vpop.f32.mrf.mxu0
        %v695 = vadd.f32 %v666, %v694
        %696 = vmatmul.f32.gmra.mxu0 %v333
        %v697 = vpop.f32.mrf.mxu0
        %v698 = vadd.f32 %v669, %v697
        %699 = vdwg.mxu0
        %700 = vmatpush.msra.mxu0 %v515
        %701 = vmatpush.msra.mxu0 %v514
        %702 = vmatpush.msra.mxu0 %v513
        %703 = vmatpush.msra.mxu0 %v512
        %704 = vmatpush.msra.mxu0 %v511
        %705 = vmatpush.msra.mxu0 %v510
        %706 = vmatpush.msra.mxu0 %v509
        %707 = vmatpush.msra.mxu0 %v508
        %708 = vmatpush.msra.mxu0 %v507
        %709 = vmatpush.msra.mxu0 %v506
        %710 = vmatpush.msra.mxu0 %v505
        %711 = vmatpush.msra.mxu0 %v504
        %712 = vmatpush.msra.mxu0 %v503
        %713 = vmatpush.msra.mxu0 %v502
        %714 = vmatpush.msra.mxu0 %v501
        %715 = vmatpush.msra.mxu0 %v500
        %716 = vmatmul.f32.gmra.mxu0 %v334
        %v717 = vpop.f32.mrf.mxu0
        %v718 = vadd.f32 %v689, %v717
        %719 = vmatmul.f32.gmra.mxu0 %v335
        %v720 = vpop.f32.mrf.mxu0
        %v721 = vadd.f32 %v692, %v720
        %722 = vmatmul.f32.gmra.mxu0 %v336
        %v723 = vpop.f32.mrf.mxu0
        %v724 = vadd.f32 %v695, %v723
        %725 = vmatmul.f32.gmra.mxu0 %v337
        %v726 = vpop.f32.mrf.mxu0
        %v727 = vadd.f32 %v698, %v726
        %728 = vdwg.mxu0
        %729 = vmatpush.msra.mxu0 %v531
        %730 = vmatpush.msra.mxu0 %v530
        %731 = vmatpush.msra.mxu0 %v529
        %732 = vmatpush.msra.mxu0 %v528
        %733 = vmatpush.msra.mxu0 %v527
        %734 = vmatpush.msra.mxu0 %v526
        %735 = vmatpush.msra.mxu0 %v525
        %736 = vmatpush.msra.mxu0 %v524
        %737 = vmatpush.msra.mxu0 %v523
        %738 = vmatpush.msra.mxu0 %v522
        %739 = vmatpush.msra.mxu0 %v521
        %740 = vmatpush.msra.mxu0 %v520
        %741 = vmatpush.msra.mxu0 %v519
        %742 = vmatpush.msra.mxu0 %v518
        %743 = vmatpush.msra.mxu0 %v517
        %744 = vmatpush.msra.mxu0 %v516
        %745 = vmatmul.f32.gmra.mxu0 %v398
        %v746 = vpop.f32.mrf.mxu0
        %v747 = vadd.f32 %v718, %v746
        %748 = vmatmul.f32.gmra.mxu0 %v401
        %v749 = vpop.f32.mrf.mxu0
        %v750 = vadd.f32 %v721, %v749
        %751 = vmatmul.f32.gmra.mxu0 %v404
        %v752 = vpop.f32.mrf.mxu0
        %v753 = vadd.f32 %v724, %v752
        %754 = vmatmul.f32.gmra.mxu0 %v407
        %v755 = vpop.f32.mrf.mxu0
        %v756 = vadd.f32 %v727, %v755
        %757 = vdwg.mxu0
        %758 = vmatpush.msra.mxu0 %v547
        %759 = vmatpush.msra.mxu0 %v546
        %760 = vmatpush.msra.mxu0 %v545
        %761 = vmatpush.msra.mxu0 %v544
        %762 = vmatpush.msra.mxu0 %v543
        %763 = vmatpush.msra.mxu0 %v542
        %764 = vmatpush.msra.mxu0 %v541
        %765 = vmatpush.msra.mxu0 %v540
        %766 = vmatpush.msra.mxu0 %v539
        %767 = vmatpush.msra.mxu0 %v538
        %768 = vmatpush.msra.mxu0 %v537
        %769 = vmatpush.msra.mxu0 %v536
        %770 = vmatpush.msra.mxu0 %v535
        %771 = vmatpush.msra.mxu0 %v534
        %772 = vmatpush.msra.mxu0 %v533
        %773 = vmatpush.msra.mxu0 %v532
        %774 = vmatmul.f32.gmra.mxu0 %v348
        %v775 = vpop.f32.mrf.mxu0
        %v776 = vadd.f32 %v747, %v775
        %777 = vmatmul.f32.gmra.mxu0 %v349
        %v778 = vpop.f32.mrf.mxu0
        %v779 = vadd.f32 %v750, %v778
        %780 = vmatmul.f32.gmra.mxu0 %v350
        %v781 = vpop.f32.mrf.mxu0
        %v782 = vadd.f32 %v753, %v781
        %783 = vmatmul.f32.gmra.mxu0 %v346
        %v784 = vpop.f32.mrf.mxu0
        %v785 = vadd.f32 %v756, %v784
        %786 = vdwg.mxu0
        %787 = vmatpush.msra.mxu0 %v563
        %788 = vmatpush.msra.mxu0 %v562
        %789 = vmatpush.msra.mxu0 %v561
        %790 = vmatpush.msra.mxu0 %v560
        %791 = vmatpush.msra.mxu0 %v559
        %792 = vmatpush.msra.mxu0 %v558
        %793 = vmatpush.msra.mxu0 %v557
        %794 = vmatpush.msra.mxu0 %v556
        %795 = vmatpush.msra.mxu0 %v555
        %796 = vmatpush.msra.mxu0 %v554
        %797 = vmatpush.msra.mxu0 %v553
        %798 = vmatpush.msra.mxu0 %v552
        %799 = vmatpush.msra.mxu0 %v551
        %800 = vmatpush.msra.mxu0 %v550
        %801 = vmatpush.msra.mxu0 %v549
        %802 = vmatpush.msra.mxu0 %v548
        %803 = vmatmul.f32.gmra.mxu0 %v352
        %v804 = vpop.f32.mrf.mxu0
        %v805 = vadd.f32 %v776, %v804
        %806 = vmatmul.f32.gmra.mxu0 %v353
        %v807 = vpop.f32.mrf.mxu0
        %v808 = vadd.f32 %v779, %v807
        %809 = vmatmul.f32.gmra.mxu0 %v354
        %v810 = vpop.f32.mrf.mxu0
        %v811 = vadd.f32 %v782, %v810
        %812 = vmatmul.f32.gmra.mxu0 %v351
        %v813 = vpop.f32.mrf.mxu0
        %v814 = vadd.f32 %v785, %v813
        %815 = vdwg.mxu0
        %816 = vmatpush.msra.mxu0 %v579
        %817 = vmatpush.msra.mxu0 %v578
        %818 = vmatpush.msra.mxu0 %v577
        %819 = vmatpush.msra.mxu0 %v576
        %820 = vmatpush.msra.mxu0 %v575
        %821 = vmatpush.msra.mxu0 %v574
        %822 = vmatpush.msra.mxu0 %v573
        %823 = vmatpush.msra.mxu0 %v572
        %824 = vmatpush.msra.mxu0 %v571
        %825 = vmatpush.msra.mxu0 %v570
        %826 = vmatpush.msra.mxu0 %v569
        %827 = vmatpush.msra.mxu0 %v568
        %828 = vmatpush.msra.mxu0 %v567
        %829 = vmatpush.msra.mxu0 %v566
        %830 = vmatpush.msra.mxu0 %v565
        %831 = vmatpush.msra.mxu0 %v564
        %832 = vmatmul.f32.gmra.mxu0 %v422
        %v833 = vpop.f32.mrf.mxu0
        %v834 = vadd.f32 %v805, %v833
        %835 = vmatmul.f32.gmra.mxu0 %v425
        %v836 = vpop.f32.mrf.mxu0
        %v837 = vadd.f32 %v808, %v836
        %838 = vmatmul.f32.gmra.mxu0 %v428
        %v839 = vpop.f32.mrf.mxu0
        %v840 = vadd.f32 %v811, %v839
        %841 = vmatmul.f32.gmra.mxu0 %v431
        %v842 = vpop.f32.mrf.mxu0
        %v843 = vadd.f32 %v814, %v842
        %844 = vdwg.mxu0
        %845 = vst [vmem:[%s273] sm:$0xff] %v834
        %846 = vst [vmem:[%s273 + $0x8] sm:$0xff] %v837
        %847 = vst [vmem:[%s273 + $0x10] sm:$0xff] %v840
        %848 = vst [vmem:[%s273 + $0x18] sm:$0xff] %v843
        %s849 = sand.u32 %s142, 1
        %s850 = scalar_lea.sflag [#allocation3], %s849
        %s851 = sand.u32 %s142, 1
        %s852 = smul.addr %s851, 32
        %s853 = scalar_lea.vmem [#allocation2], %s852
        // Predicated region
        $region37: #{downsample.1} parent=35 // pred_check
          %p854 = pneg %p152
        $region38: #{downsample.1} parent=35 // pred_check_branch
          %856 = sbr.rel (%p854) target = $region40
        $region39: #{downsample.1} parent=35 // pred_region
          %s857 = smul.u32 4, %s23
          %859 = vsyncadd %s850, 0
          %s860 = smul.addr %s22, 8
          %s861 = sadd.s32 %s857, %s860
          %s862 = smul.addr %s861, 8
          %s863 = scalar_lea.hbm %s4, %s862
          %s864 = sshll.u32 %s853, 4
          %s865 = int_to_ptr.vmem [resolvable:$true] %s864
          %s866 = sshll.u32 %s863, 4
          %s867 = int_to_ptr.hbm [resolvable:$true] %s866
          %872 = dma.vmem_to_hbm [thread:$0]  %s865, 512, %s867, %s850, 128, 128, 8
        $region40: #{downsample.1} parent=35 // pred_fallthru
          _
      $region36: #{downsample.1} parent=5 // pred_fallthru
        _
      %p873 = scmp.le.s32.totalorder 2, %s13
      // Predicated region
      $region41: #{downsample.1} parent=5 // pred_check
        %p874 = pneg %p873
      $region42: #{downsample.1} parent=5 // pred_check_branch
        %876 = sbr.rel (%p874) target = $region44
      $region43: #{downsample.1} parent=5 // pred_region
        %s877 = ssub.s32 %s13, 2
        // Predicated region
        $region45: #{downsample.1} parent=43 // pred_check
          %p878 = pneg %p158
        $region46: #{downsample.1} parent=43 // pred_check_branch
          %880 = sbr.rel (%p878) target = $region48
        $region47: #{downsample.1} parent=43 // pred_region
          %s881 = sand.u32 %s143, 1
          %s882 = scalar_lea.sflag [#allocation3], %s881
          %s883 = sand.u32 %s143, 1
          %s884 = smul.addr %s883, 32
          %s885 = scalar_lea.vmem [#allocation2], %s884
          %887 = dma.done %s882, 512
        $region48: #{downsample.1} parent=43 // pred_fallthru
          _
      $region44: #{downsample.1} parent=5 // pred_fallthru
        _
    $region6: #{downsample.1} parent=1 // loop_footer
      %s17 = sadd.s32 1, %s13
    $region7: #{downsample.1} parent=1 // loop_footer_branch
      %12 = sbr.rel target = $region3
    $region8: #{downsample.1} parent=1 // loop_exit
      _
    %888 = vsyncpa [#allocation3], 1
    %s889 = scalar_lea.sflag [#allocation3], 1
    %890 = vsyncpa %s889, 1

</llo_original>
